<compile_context>
chip_gen: v7x
topology: tpu7x:2x2x1
jax: 0.10.0
libtpu: 0.0.40
codegen_flags: <defaults>
</compile_context>

<pallas_src>
import functools
import math

import jax
import jax.numpy as jnp
from jax.experimental import pallas as pl
from jax.experimental.pallas import tpu as pltpu

BN_EPS = 1e-5
BN_SCALE = 1.0 / math.sqrt(1.0 + BN_EPS)  # gamma=1, running_var=1, running_mean=0
LEAKY_SLOPE = 0.1

VMEM_WS_BUDGET = 12 * 1024 * 1024   # per-step double-buffered working-set cap (v7x-safe)
VMEM_LIMIT = 32 * 1024 * 1024       # explicit scoped-VMEM limit (fits v7x 64 MiB physical)


def _round_up(x, m):
    return (x + m - 1) // m * m


def _leaky(y):
    return jnp.where(y > 0, y, LEAKY_SLOPE * y)


# --------------------------------------------------------------------------- #
# Tiled matmul kernels (1x1 convs, im2col fallback, upsample-concat fusion).
# Epilogue fuses bias, LeakyReLU(0.1) and an optional residual (pre- or
# post-activation).
# --------------------------------------------------------------------------- #
def _epilogue(y, b, r, o_ref, act, pre_act):
    y = y + b
    if r is not None and pre_act:
        y = y + r.astype(jnp.float32)
    if act:
        y = _leaky(y)
    if r is not None and not pre_act:
        y = y + r.astype(jnp.float32)
    o_ref[...] = y.astype(o_ref.dtype)


def _make_mm_kernel(act, has_res, pre_act, ksplit):
    if not ksplit:
        # Single K step: no accumulator scratch, no pl.when in the hot path.
        def kernel(*refs):
            if has_res:
                a_ref, w_ref, b_ref, r_ref, o_ref = refs
                r = r_ref[...]
            else:
                a_ref, w_ref, b_ref, o_ref = refs
                r = None
            y = jnp.dot(a_ref[...], w_ref[...],
                        preferred_element_type=jnp.float32)
            _epilogue(y, b_ref[...], r, o_ref, act, pre_act)
        return kernel

    def kernel(*refs):
        if has_res:
            a_ref, w_ref, b_ref, r_ref, o_ref, acc_ref = refs
        else:
            a_ref, w_ref, b_ref, o_ref, acc_ref = refs

        k = pl.program_id(2)

        @pl.when(k == 0)
        def _():
            acc_ref[...] = jnp.zeros_like(acc_ref)

        acc_ref[...] += jnp.dot(a_ref[...], w_ref[...],
                                preferred_element_type=jnp.float32)

        @pl.when(k == pl.num_programs(2) - 1)
        def _():
            r = r_ref[...] if has_res else None
            _epilogue(acc_ref[...], b_ref[...], r, o_ref, act, pre_act)
    return kernel


def _choose_tiles(M, K, Np):
    """Pick (tm, tn, tk) under a VMEM working-set budget; never pad K."""
    tn = 256 if Np % 256 == 0 else 128
    tms = [t for t in (512, 256, 128) if M % t == 0] or [M]
    if K % 128 == 0:
        tks = [d for d in range(K, 0, -128) if K % d == 0]  # exact divisors only
    else:
        tks = [K]  # small/odd K: single full-extent block (no padding)

    def fits(tm, tk):
        ws = 2 * 2 * (tm * tk + tk * tn + tm * tn) + 4 * tm * tn
        return ws <= VMEM_WS_BUDGET

    tm_sel, tk_sel, found = tms[-1], tks[-1], False
    for tm in tms:                      # prefer big tm (weight reuse) ...
        for tk in tks:                  # ... then biggest tk (fewest K steps)
            if fits(tm, tk):
                tm_sel, tk_sel, found = tm, tk, True
                break
        if found:
            break
    tm, tk = tm_sel, tk_sel

    # Keep >= 2 blocks on the parallel grid axes when cheap (v7x has 2 TCs).
    if M // tm == 1 and Np // tn == 1:
        if tn == 256:
            tn = 128
        elif tm % 16 == 0:
            tm //= 2
    return tm, tn, tk


def fused_matmul(a, w, bias, *, act, residual=None, pre_act=False,
                 out_dtype=jnp.bfloat16):
    """a: (M, K) bf16, w: (K, Np) bf16 (pre-padded), bias: (1, Np) f32.
    residual: (M, C<=Np), added post-activation (default) or pre-activation."""
    M, K = a.shape
    Kw, Np = w.shape
    assert Kw == K, (Kw, K)
    tm, tn, tk = _choose_tiles(M, K, Np)
    nk = K // tk

    has_res = residual is not None
    if has_res and residual.shape[1] != Np:
        residual = jnp.pad(residual, ((0, 0), (0, Np - residual.shape[1])))

    out_bytes = 4 if out_dtype == jnp.float32 else 2
    cost = pl.CostEstimate(
        flops=2 * M * K * Np,
        transcendentals=0,
        bytes_accessed=(M * K + K * Np) * 2 + M * Np * out_bytes
                       + (M * Np * 2 if has_res else 0) + Np * 4,
    )

    if nk == 1:
        grid = (M // tm, Np // tn)
        in_specs = [
            pl.BlockSpec((tm, K), lambda i, j: (i, 0)),
            pl.BlockSpec((K, tn), lambda i, j: (0, j)),
            pl.BlockSpec((1, tn), lambda i, j: (0, j)),
        ]
        if has_res:
            in_specs.append(pl.BlockSpec((tm, tn), lambda i, j: (i, j)))
        out_spec = pl.BlockSpec((tm, tn), lambda i, j: (i, j))
        scratch = []
        semantics = ("parallel", "parallel")
    else:
        grid = (M // tm, Np // tn, nk)
        in_specs = [
            pl.BlockSpec((tm, tk), lambda i, j, k: (i, k)),
            pl.BlockSpec((tk, tn), lambda i, j, k: (k, j)),
            pl.BlockSpec((1, tn), lambda i, j, k: (0, j)),
        ]
        if has_res:
            in_specs.append(pl.BlockSpec((tm, tn), lambda i, j, k: (i, j)))
        out_spec = pl.BlockSpec((tm, tn), lambda i, j, k: (i, j))
        scratch = [pltpu.VMEM((tm, tn), jnp.float32)]
        semantics = ("parallel", "parallel", "arbitrary")

    kern = _make_mm_kernel(act, has_res, pre_act, ksplit=(nk > 1))
    args = [a, w, bias] + ([residual] if has_res else [])
    return pl.pallas_call(
        kern,
        out_shape=jax.ShapeDtypeStruct((M, Np), out_dtype),
        grid_spec=pltpu.PrefetchScalarGridSpec(
            num_scalar_prefetch=0,
            grid=grid,
            in_specs=in_specs,
            out_specs=out_spec,
            scratch_shapes=scratch,
        ),
        compiler_params=pltpu.CompilerParams(
            dimension_semantics=semantics,
            vmem_limit_bytes=VMEM_LIMIT),
        cost_estimate=cost,
    )(*args)


# --------------------------------------------------------------------------- #
# In-kernel im2col ("tap") conv for 3x3 stride-1 convs with Cin % 128 == 0:
# reads the padded NHWC image once and accumulates the 9 shifted-window
# matmuls in f32; bias + LeakyReLU + optional residual fused in the epilogue.
# --------------------------------------------------------------------------- #
def _tap_kernel(*refs, H, W, act, has_res):
    if has_res:
        x_ref, w_ref, b_ref, r_ref, o_ref = refs
    else:
        x_ref, w_ref, b_ref, o_ref = refs
        r_ref = None
    tn = o_ref.shape[-1]
    b = b_ref[...]                                            # (1, tn) f32
    for h in range(H):                                        # unrolled (small H here)
        acc = jnp.zeros((W, tn), jnp.float32)
        for dy in range(3):
            for dx in range(3):
                win = x_ref[0, h + dy, dx:dx + W, :]          # (W, Cin) shifted window
                acc = acc + jnp.dot(win, w_ref[dy * 3 + dx],
                                    preferred_element_type=jnp.float32)
        y = acc + b
        if act:
            y = _leaky(y)
        if has_res:
            y = y + r_ref[0, h].astype(jnp.float32)
        o_ref[0, h] = y.astype(o_ref.dtype)


def conv3x3_tap(x, spec, residual=None, out_dtype=jnp.bfloat16):
    Nb, H, W, Cin = x.shape
    w, bias = spec["w"], spec["bias"]            # (9, Cin, Np) bf16, (1, Np) f32
    Np = w.shape[-1]
    xp = jnp.pad(x, ((0, 0), (1, 1), (1, 1), (0, 0)))

    tn = 256 if Np % 256 == 0 else 128
    if Nb * (Np // tn) < 2 and tn == 256:
        tn = 128
    has_res = residual is not None
    if has_res and residual.shape[-1] != Np:
        residual = jnp.pad(
            residual, ((0, 0), (0, 0), (0, 0), (0, Np - residual.shape[-1])))

    in_specs = [
        pl.BlockSpec((1, H + 2, W + 2, Cin), lambda b, j: (b, 0, 0, 0)),
        pl.BlockSpec((9, Cin, tn), lambda b, j: (0, 0, j)),
        pl.BlockSpec((1, tn), lambda b, j: (0, j)),
    ]
    args = [xp, w, bias]
    if has_res:
        in_specs.append(pl.BlockSpec((1, H, W, tn), lambda b, j: (b, 0, 0, j)))
        args.append(residual)

    cost = pl.CostEstimate(
        flops=2 * Nb * H * W * 9 * Cin * Np,
        transcendentals=0,
        bytes_accessed=xp.size * 2 + w.size * 2 + Nb * H * W * Np * 2
                       + (residual.size * 2 if has_res else 0) + Np * 4,
    )
    kern = functools.partial(_tap_kernel, H=H, W=W, act=spec["act"],
                             has_res=has_res)
    return pl.pallas_call(
        kern,
        out_shape=jax.ShapeDtypeStruct((Nb, H, W, Np), out_dtype),
        grid_spec=pltpu.PrefetchScalarGridSpec(
            num_scalar_prefetch=0,
            grid=(Nb, Np // tn),
            in_specs=in_specs,
            out_specs=pl.BlockSpec((1, H, W, tn), lambda b, j: (b, 0, 0, j)),
        ),
        compiler_params=pltpu.CompilerParams(
            dimension_semantics=("parallel", "parallel"),
            vmem_limit_bytes=VMEM_LIMIT),
        cost_estimate=cost,
    )(*args)


# --------------------------------------------------------------------------- #
# Conv dispatcher and the fused upsample + concat + 1x1 conv.
# --------------------------------------------------------------------------- #
def conv2d(x, spec, residual=None, out_dtype=jnp.bfloat16):
    Nb, H, W, Cin = x.shape
    cout = spec["cout"]
    Np = spec["w"].shape[-1]
    ktype = spec["ktype"]
    if ktype == "mm":                         # 1x1 conv -> plain matmul
        M = Nb * H * W
        r = None if residual is None else residual.reshape(M, residual.shape[-1])
        y = fused_matmul(x.reshape(M, Cin), spec["w"], spec["bias"],
                         act=spec["act"], residual=r, out_dtype=out_dtype)
        y = y.reshape(Nb, H, W, Np)
    elif ktype == "tap":                      # 3x3 stride-1, in-kernel im2col
        y = conv3x3_tap(x, spec, residual=residual, out_dtype=out_dtype)
    else:                                     # im2col fallback (stride-2 / tiny Cin)
        s, p, k = spec["stride"], spec["pad"], spec["ksize"]
        Ho = (H + 2 * p - k) // s + 1
        Wo = (W + 2 * p - k) // s + 1
        xp = jnp.pad(x, ((0, 0), (p, p), (p, p), (0, 0)))
        cols = []
        for dy in range(k):
            for dx in range(k):
                cols.append(xp[:, dy:dy + s * (Ho - 1) + 1:s,
                                  dx:dx + s * (Wo - 1) + 1:s, :])
        patches = jnp.stack(cols, axis=3).reshape(Nb * Ho * Wo, k * k * Cin)
        r = None if residual is None else residual.reshape(Nb * Ho * Wo,
                                                           residual.shape[-1])
        y = fused_matmul(patches, spec["w"], spec["bias"],
                         act=spec["act"], residual=r, out_dtype=out_dtype)
        y = y.reshape(Nb, Ho, Wo, Np)
    return y if cout == Np else y[..., :cout]


def up_concat_conv1x1(x_low, route, spec):
    """LeakyReLU(cat([up2x(x_low), route]) @ W + b), without the materialized concat."""
    Nb, Hl, Wl, Cl = x_low.shape
    Np = spec["w_route"].shape[-1]
    # Partial product of the low-res branch (bias / activation deferred).
    p = fused_matmul(x_low.reshape(Nb * Hl * Wl, Cl), spec["w_low"],
                     spec["zero_bias"], act=False)
    p = p.reshape(Nb, Hl, Wl, Np)
    # Nearest 2x upsample of the (narrow) partial product.
    p = jnp.broadcast_to(p[:, :, None, :, None, :],
                         (Nb, Hl, 2, Wl, 2, Np)).reshape(Nb, 2 * Hl, 2 * Wl, Np)
    Hh, Wh, Cr = route.shape[1:]
    y = fused_matmul(route.reshape(Nb * Hh * Wh, Cr), spec["w_route"],
                     spec["bias"], act=True,
                     residual=p.reshape(Nb * Hh * Wh, Np), pre_act=True)
    return y.reshape(Nb, Hh, Wh, Np)


# --------------------------------------------------------------------------- #
# Deterministic parameter construction (mirrors the PyTorch __init__ shapes),
# eval-mode BN folded into weights/bias, weights pre-padded / pre-reshaped.
# --------------------------------------------------------------------------- #
class KeyGen:
    def __init__(self, key):
        self.key = key

    def __call__(self):
        self.key, k = jax.random.split(self.key)
        return k


def _kaiming(key, kh, kw, cin, cout):
    # kaiming_normal_, mode='fan_out', nonlinearity='leaky_relu'
    fan_out = kh * kw * cout
    std = math.sqrt(2.0 / fan_out)
    return std * jax.random.normal(key, (kh, kw, cin, cout), jnp.float32)


def _conv_bias(key, kh, kw, cin, cout):
    fan_in = kh * kw * cin
    bound = 1.0 / math.sqrt(fan_in)
    return jax.random.uniform(key, (cout,), jnp.float32, -bound, bound)


def _pad_last(x, n):
    d = n - x.shape[-1]
    if d == 0:
        return x
    return jnp.pad(x, [(0, 0)] * (x.ndim - 1) + [(0, d)])


def _pack_conv(w, bias, k, s, p, act):
    """Pre-reshape / channel-pad conv weights into the layout its kernel consumes."""
    kh, kw, cin, cout = w.shape
    np_ = _round_up(cout, 128)
    bias_p = _pad_last(bias.astype(jnp.float32), np_).reshape(1, np_)
    if k == 1:
        ktype, w_p = "mm", _pad_last(w.reshape(cin, cout), np_)
    elif s == 1 and cin % 128 == 0:
        ktype, w_p = "tap", _pad_last(w.reshape(kh * kw, cin, cout), np_)
    else:
        ktype, w_p = "im2col", _pad_last(w.reshape(kh * kw * cin, cout), np_)
    return dict(ktype=ktype, w=w_p.astype(jnp.bfloat16), bias=bias_p,
                stride=s, pad=p, ksize=k, act=act, cout=cout)


def make_cnn(kg, cin, cout, k, s, p):
    # CNNBlock: Conv2d(bias=False) -> BN(eval) -> LeakyReLU(0.1) -> Dropout2d(eval=id)
    w = _kaiming(kg(), k, k, cin, cout) * BN_SCALE           # fold BN scale
    spec = _pack_conv(w, jnp.zeros((cout,), jnp.float32), k, s, p, act=True)
    spec["kind"] = "cnn"
    return spec


def make_conv_bn_act(kg, cin, cout, k, p):
    # plain Conv2d(bias=True) -> BN(eval) -> LeakyReLU(0.1)  (ResidualBlock / ScalePred)
    b = _conv_bias(kg(), k, k, cin, cout)
    w = _kaiming(kg(), k, k, cin, cout) * BN_SCALE
    return _pack_conv(w, b * BN_SCALE, k, 1, p, act=True)


def make_res(kg, ch, use_residual, num_repeats):
    reps = []
    for _ in range(num_repeats):
        c1 = make_conv_bn_act(kg, ch, ch // 2, 1, 0)
        c2 = make_conv_bn_act(kg, ch // 2, ch, 3, 1)
        reps.append((c1, c2))
    return dict(kind="res", reps=reps, use_residual=use_residual,
                num_repeats=num_repeats)


def make_scale_pred(kg, cin, num_classes):
    c1 = make_conv_bn_act(kg, cin, 2 * cin, 3, 1)
    cout = (num_classes + 5) * 3
    b = _conv_bias(kg(), 1, 1, 2 * cin, cout)
    w = _kaiming(kg(), 1, 1, 2 * cin, cout)                  # final conv: no BN fold
    c2 = _pack_conv(w, b, 1, 1, 0, act=False)
    return dict(kind="scale", conv1=c1, conv2=c2, num_classes=num_classes)


def make_up_cnn(kg, c_low, c_route, cout):
    # nn.Upsample(2x nearest) + cat([x_up, route]) + CNNBlock(cout, 1x1), with the
    # concat folded into a split-weight, two-term matmul.
    w = _kaiming(kg(), 1, 1, c_low + c_route, cout) * BN_SCALE
    np_ = _round_up(cout, 128)
    w2 = _pad_last(w.reshape(c_low + c_route, cout), np_).astype(jnp.bfloat16)
    zeros = jnp.zeros((1, np_), jnp.float32)
    return dict(kind="up_cnn", w_low=w2[:c_low], w_route=w2[c_low:],
                bias=zeros, zero_bias=zeros, cout=cout)


def build_yolov3(key, in_channels=3, num_classes=20):
    kg = KeyGen(key)
    L = []
    L.append(make_cnn(kg, in_channels, 32, 3, 1, 1))
    L.append(make_cnn(kg, 32, 64, 3, 2, 1))
    L.append(make_res(kg, 64, True, 1))
    L.append(make_cnn(kg, 64, 128, 3, 2, 1))
    L.append(make_res(kg, 128, True, 2))
    L.append(make_cnn(kg, 128, 256, 3, 2, 1))
    L.append(make_res(kg, 256, True, 8))
    L.append(make_cnn(kg, 256, 512, 3, 2, 1))
    L.append(make_res(kg, 512, True, 8))
    L.append(make_cnn(kg, 512, 1024, 3, 2, 1))
    L.append(make_res(kg, 1024, True, 4))
    L.append(make_cnn(kg, 1024, 512, 1, 1, 0))
    L.append(make_cnn(kg, 512, 1024, 3, 1, 1))
    L.append(make_res(kg, 1024, False, 1))
    L.append(make_cnn(kg, 1024, 512, 1, 1, 0))
    L.append(make_scale_pred(kg, 512, num_classes))
    L.append(make_cnn(kg, 512, 256, 1, 1, 0))
    L.append(make_up_cnn(kg, 256, 512, 256))    # Upsample + cat + CNNBlock(768->256, 1x1)
    L.append(make_cnn(kg, 256, 512, 3, 1, 1))
    L.append(make_res(kg, 512, False, 1))
    L.append(make_cnn(kg, 512, 256, 1, 1, 0))
    L.append(make_scale_pred(kg, 256, num_classes))
    L.append(make_cnn(kg, 256, 128, 1, 1, 0))
    L.append(make_up_cnn(kg, 128, 256, 128))    # Upsample + cat + CNNBlock(384->128, 1x1)
    L.append(make_cnn(kg, 128, 256, 3, 1, 1))
    L.append(make_res(kg, 256, False, 1))
    L.append(make_cnn(kg, 256, 128, 1, 1, 0))
    L.append(make_scale_pred(kg, 128, num_classes))
    return L


# --------------------------------------------------------------------------- #
# Forward pass (mirrors YOLOv3.forward, eval semantics)
# --------------------------------------------------------------------------- #
def yolov3_forward(layers, x_nchw):
    x = jnp.transpose(x_nchw, (0, 2, 3, 1)).astype(jnp.bfloat16)  # NCHW -> NHWC bf16
    outputs, routes = [], []
    for layer in layers:
        kind = layer["kind"]
        if kind == "scale":
            y = conv2d(x, layer["conv1"])
            y = conv2d(y, layer["conv2"], out_dtype=jnp.float32)
            Nb, H, W, _ = y.shape
            nc = layer["num_classes"]
            y = y.reshape(Nb, H, W, 3, nc + 5)
            outputs.append(jnp.transpose(y, (0, 3, 1, 2, 4)))  # (N, 3, H, W, nc+5)
            continue
        if kind == "cnn":
            x = conv2d(x, layer)
        elif kind == "res":
            for c1, c2 in layer["reps"]:
                res = x
                h = conv2d(x, c1)
                x = conv2d(h, c2,
                           residual=res if layer["use_residual"] else None)
            if layer["num_repeats"] == 8:
                routes.append(x)
        elif kind == "up_cnn":
            x = up_concat_conv1x1(x, routes.pop(), layer)
    return outputs


if __name__ == "__main__":
    key = jax.random.PRNGKey(0)
    k_in, k_params = jax.random.split(key)
    # PyTorch-style NCHW input: batch=2, in_channels=3, spatial=32 (divisible by 32).
    x = jax.random.normal(k_in, (2, 3, 32, 32), jnp.float32)
    layers = build_yolov3(k_params, in_channels=3, num_classes=20)
    outs = yolov3_forward(layers, x)
    outs = jax.block_until_ready(outs)
    expected = [(2, 3, 1, 1, 25), (2, 3, 2, 2, 25), (2, 3, 4, 4, 25)]
    got = [tuple(o.shape) for o in outs]
    assert got == expected, got
    assert all(bool(jnp.all(jnp.isfinite(o))) for o in outs)
    print("KERNEL_OK")
</pallas_src>

<mosaic_0001>
module attributes {stable_mosaic.version = 11 : i64} {
  func.func @kernel(%arg0: i32, %arg1: i32, %arg2: memref<512x27xbf16, #tpu.memory_space<vmem>>, %arg3: memref<27x128xbf16, #tpu.memory_space<vmem>>, %arg4: memref<1x128xf32, #tpu.memory_space<vmem>>, %arg5: memref<512x128xbf16, #tpu.memory_space<vmem>>) attributes {dimension_semantics = [#tpu.dimension_semantics<parallel>, #tpu.dimension_semantics<parallel>], iteration_bounds = array<i64: 4, 1>, scalar_prefetch = 0 : i64, scratch_operands = 0 : i64, tpu.core_type = #tpu.core_type<tc>, window_params = [{transform_indices = @transform_0, window_bounds = array<i64: 512, 27>}, {transform_indices = @transform_1, window_bounds = array<i64: 27, 128>}, {transform_indices = @transform_2, window_bounds = array<i64: 1, 128>}, {transform_indices = @transform_3, window_bounds = array<i64: 512, 128>}]} {
    %c0 = arith.constant 0 : index
    %c0_0 = arith.constant 0 : index
    %0 = vector.load %arg2[%c0, %c0_0] : memref<512x27xbf16, #tpu.memory_space<vmem>>, vector<512x27xbf16>
    %c0_1 = arith.constant 0 : index
    %c0_2 = arith.constant 0 : index
    %1 = vector.load %arg3[%c0_1, %c0_2] : memref<27x128xbf16, #tpu.memory_space<vmem>>, vector<27x128xbf16>
    %cst = arith.constant dense<0.000000e+00> : vector<512x128xf32>
    %2 = tpu.matmul %0, %1, %cst {dimension_numbers = #tpu.dot_dimension_numbers<[1], [0], [0], [1], [0, 0, 1, 1], [], []>} : vector<512x27xbf16>, vector<27x128xbf16>, vector<512x128xf32> -> vector<512x128xf32>
    %c0_3 = arith.constant 0 : index
    %c0_4 = arith.constant 0 : index
    %3 = vector.load %arg4[%c0_3, %c0_4] : memref<1x128xf32, #tpu.memory_space<vmem>>, vector<1x128xf32>
    %4 = vector.broadcast %3 : vector<1x128xf32> to vector<512x128xf32>
    %5 = arith.addf %2, %4 : vector<512x128xf32>
    %cst_5 = arith.constant 0.000000e+00 : f32
    %6 = vector.broadcast %cst_5 : f32 to vector<512x128xf32>
    %7 = arith.cmpf ogt, %5, %6 : vector<512x128xf32>
    %cst_6 = arith.constant 1.000000e-01 : f32
    %8 = vector.broadcast %cst_6 : f32 to vector<512x128xf32>
    %9 = arith.mulf %8, %5 : vector<512x128xf32>
    %10 = arith.select %7, %5, %9 : vector<512x128xi1>, vector<512x128xf32>
    %11 = arith.truncf %10 : vector<512x128xf32> to vector<512x128xbf16>
    %c0_7 = arith.constant 0 : index
    %c0_8 = arith.constant 0 : index
    %12 = vector.load %arg5[%c0_7, %c0_8] : memref<512x128xbf16, #tpu.memory_space<vmem>>, vector<512x128xbf16>
    tpu.vector_store %arg5[%c0_7, %c0_8], %11 {strides = array<i32>} : memref<512x128xbf16, #tpu.memory_space<vmem>>, vector<512x128xbf16>,
    return
  }
  func.func @transform_0(%arg0: i32, %arg1: i32) -> (i32, i32) {
    %c0_i32 = arith.constant 0 : i32
    %c0_i32_0 = arith.constant 0 : i32
    return %arg0, %c0_i32 : i32, i32
  }
  func.func @transform_1(%arg0: i32, %arg1: i32) -> (i32, i32) {
    %c0_i32 = arith.constant 0 : i32
    %c0_i32_0 = arith.constant 0 : i32
    return %c0_i32, %arg1 : i32, i32
  }
  func.func @transform_2(%arg0: i32, %arg1: i32) -> (i32, i32) {
    %c0_i32 = arith.constant 0 : i32
    %c0_i32_0 = arith.constant 0 : i32
    return %c0_i32, %arg1 : i32, i32
  }
  func.func @transform_3(%arg0: i32, %arg1: i32) -> (i32, i32) {
    %c0_i32 = arith.constant 0 : i32
    return %arg0, %arg1 : i32, i32
  }
}

</mosaic_0001>

<llo_original>
// kernel: tpu_custom_call.1
$region0: #{tpu_custom_call.1}
  #allocation0 [shape = 'u32[]', space=smem, size = 0x4, offset = 0x4, fixed_abs, tag = 'smem constant byte address 0x4 - core index']
  #allocation1 [shape = 'u32[144,128]{1,0:T(1,128)}', space=vmem, size = 0x12000, scoped, tag = 'internal scratch']
  %s0 = inlined_call_operand.vmem [shape: bf16[2048,27], index: 0, kind: input, shape index: {}]
  %s1 = inlined_call_operand.vmem [shape: bf16[27,128], index: 1, kind: input, shape index: {}]
  %s2 = inlined_call_operand.vmem [shape: f32[1,128], index: 2, kind: input, shape index: {}]
  %s3 = inlined_call_operand.hbm [shape: bf16[2048,128], index: 3, kind: output, shape index: {}]
  %s4 = sld [smem:[#allocation0]]
  $region45: #{tpu_custom_call.1} parent=0
    _
  %s6 = ssub.s32 1, %s4
  %s7 = scalar_select 0, %s6, %s4
  $region1: #{tpu_custom_call.1} parent=0
    #allocation2 [shape = 'u8[262144]{0}', space=vmem, size = 0x40000, scoped, tag = 'output window, operand 0']
    #allocation3 [shape = 's32[2]{0}', space=sflag, size = 0x8, scoped, tag = 'scoped memory for tpu_custom_call.1']
    %8 = vsyncpa [#allocation3], 0
    %s9 = scalar_lea.sflag [#allocation3], 1
    %10 = vsyncpa %s9, 0
    loop: start=0, step=1, limit=6
    $region2: #{tpu_custom_call.1} parent=1 // loop_pre_header
      _
    $region3: #{tpu_custom_call.1} parent=1 // loop_header
      %s12 = sphi 0, %s16
      %p13 = scmp.ge.s32.totalorder %s12, 6
      %s19 = sphi 0, %s31
      %s20 = sphi 0, %s27
      %s21 = sphi 0, %s19
      %s22 = sphi 0, %s20
      %s23 = sphi 0, %s21
      %s24 = sphi 0, %s22
      %s34 = sphi 0, %s36
      %s37 = sphi 0, %s34
      %s38 = sphi 0, %s37
      %s54 = sphi 0, %s38
      %s60 = sphi 0, %s62
      %s63 = sphi 0, %s60
      %s64 = sphi 0, %s63
      %s80 = sphi 0, %s64
      %s86 = sphi 0, %s88
      %s89 = sphi 0, %s86
      %s90 = sphi 0, %s89
      %s106 = sphi 0, %s90
      %s114 = sphi 0, %s116
      %s117 = sphi 0, %s114
      %s118 = sphi 0, %s117
      %s134 = sphi 0, %s118
    $region4: #{tpu_custom_call.1} parent=1 // loop_header_branch
      %15 = sbr.rel (%p13) target = $region8
    $region5: #{tpu_custom_call.1} parent=1 // loop_body
      %s17 = ssub.s32 %s12, 1
      %s18 = ssub.s32 %s12, 2
      %s25 = sadd.s32 1, %s20
      %p26 = scmp.ge.s32.totalorder %s25, 1
      %s27 = scalar_select %p26, 0, %s25
      %s28 = sadd.s32 1, %s19
      %s29 = scalar_select %p26, %s28, %s19
      %p30 = scmp.ge.s32.totalorder %s29, 4
      %s31 = scalar_select %p30, 0, %s29
      %s32 = ssub.s32 %s19, %s31
      %p33 = scmp.eq.s32.totalorder %s32, 0
      %s35 = sadd.s32 %s34, 1
      %s36 = scalar_select %p33, %s34, %s35
      %p39 = pneg %p33
      %p40 = scmp.eq.s32.totalorder %s12, 3
      %p41 = por %p39, %p40
      %p42 = scmp.ne.s32.totalorder %s34, %s37
      %p43 = scmp.eq.s32.totalorder %s12, 0
      %p44 = por %p42, %p43
      %p45 = scmp.ne.s32.totalorder %s34, %s37
      %p46 = scmp.eq.s32.totalorder %s17, 3
      %p47 = por %p45, %p46
      %p48 = scmp.ne.s32.totalorder %s37, %s38
      %p49 = scmp.eq.s32.totalorder %s17, 0
      %p50 = por %p48, %p49
      %p51 = scmp.ne.s32.totalorder %s37, %s38
      %p52 = scmp.eq.s32.totalorder %s18, 3
      %p53 = por %p51, %p52
      %p55 = scmp.ne.s32.totalorder %s38, %s54
      %p56 = scmp.eq.s32.totalorder %s18, 0
      %p57 = por %p55, %p56
      %s58 = ssub.s32 %s20, %s27
      %p59 = scmp.eq.s32.totalorder %s58, 0
      %s61 = sadd.s32 %s60, 1
      %s62 = scalar_select %p59, %s60, %s61
      %p65 = pneg %p59
      %p66 = scmp.eq.s32.totalorder %s12, 3
      %p67 = por %p65, %p66
      %p68 = scmp.ne.s32.totalorder %s60, %s63
      %p69 = scmp.eq.s32.totalorder %s12, 0
      %p70 = por %p68, %p69
      %p71 = scmp.ne.s32.totalorder %s60, %s63
      %p72 = scmp.eq.s32.totalorder %s17, 3
      %p73 = por %p71, %p72
      %p74 = scmp.ne.s32.totalorder %s63, %s64
      %p75 = scmp.eq.s32.totalorder %s17, 0
      %p76 = por %p74, %p75
      %p77 = scmp.ne.s32.totalorder %s63, %s64
      %p78 = scmp.eq.s32.totalorder %s18, 3
      %p79 = por %p77, %p78
      %p81 = scmp.ne.s32.totalorder %s64, %s80
      %p82 = scmp.eq.s32.totalorder %s18, 0
      %p83 = por %p81, %p82
      %s84 = ssub.s32 %s20, %s27
      %p85 = scmp.eq.s32.totalorder %s84, 0
      %s87 = sadd.s32 %s86, 1
      %s88 = scalar_select %p85, %s86, %s87
      %p91 = pneg %p85
      %p92 = scmp.eq.s32.totalorder %s12, 3
      %p93 = por %p91, %p92
      %p94 = scmp.ne.s32.totalorder %s86, %s89
      %p95 = scmp.eq.s32.totalorder %s12, 0
      %p96 = por %p94, %p95
      %p97 = scmp.ne.s32.totalorder %s86, %s89
      %p98 = scmp.eq.s32.totalorder %s17, 3
      %p99 = por %p97, %p98
      %p100 = scmp.ne.s32.totalorder %s89, %s90
      %p101 = scmp.eq.s32.totalorder %s17, 0
      %p102 = por %p100, %p101
      %p103 = scmp.ne.s32.totalorder %s89, %s90
      %p104 = scmp.eq.s32.totalorder %s18, 3
      %p105 = por %p103, %p104
      %p107 = scmp.ne.s32.totalorder %s90, %s106
      %p108 = scmp.eq.s32.totalorder %s18, 0
      %p109 = por %p107, %p108
      %s110 = ssub.s32 %s19, %s31
      %s111 = ssub.s32 %s20, %s27
      %s112 = sor.u32 %s110, %s111
      %p113 = scmp.eq.s32.totalorder %s112, 0
      %s115 = sadd.s32 %s114, 1
      %s116 = scalar_select %p113, %s114, %s115
      %p119 = pneg %p113
      %p120 = scmp.eq.s32.totalorder %s12, 3
      %p121 = por %p119, %p120
      %p122 = scmp.ne.s32.totalorder %s114, %s117
      %p123 = scmp.eq.s32.totalorder %s12, 0
      %p124 = por %p122, %p123
      %p125 = scmp.ne.s32.totalorder %s114, %s117
      %p126 = scmp.eq.s32.totalorder %s17, 3
      %p127 = por %p125, %p126
      %p128 = scmp.ne.s32.totalorder %s117, %s118
      %p129 = scmp.eq.s32.totalorder %s17, 0
      %p130 = por %p128, %p129
      %p131 = scmp.ne.s32.totalorder %s117, %s118
      %p132 = scmp.eq.s32.totalorder %s18, 3
      %p133 = por %p131, %p132
      %p135 = scmp.ne.s32.totalorder %s118, %s134
      %p136 = scmp.eq.s32.totalorder %s18, 0
      %p137 = por %p135, %p136
      %p138 = scmp.le.s32.totalorder 1, %s12
      %p139 = scmp.lt.s32.totalorder %s12, 5
      %p140 = pnand %p138, %p139
      %p141 = pneg %p140
      // Predicated region
      $region9: #{tpu_custom_call.1} parent=5 // pred_check
        _
      $region10: #{tpu_custom_call.1} parent=5 // pred_check_branch
        %143 = sbr.rel (%p140) target = $region12
      $region11: #{tpu_custom_call.1} parent=5 // pred_region
        %s144 = ssub.s32 %s12, 1
        // Predicated region
        $region13: #{tpu_custom_call.1} parent=11 // pred_check
          %p145 = pneg %p76
        $region14: #{tpu_custom_call.1} parent=11 // pred_check_branch
          %147 = sbr.rel (%p145) target = $region16
        $region15: #{tpu_custom_call.1} parent=11 // pred_region
          %p148 = scmp.lt.s32.totalorder %s22, 0
          %s149 = scalar_select %p148, %s22, 0
          %s150 = smul.addr %s149, 4
          %s151 = scalar_lea.vmem %s1, %s150
        $region16: #{tpu_custom_call.1} parent=11 // pred_fallthru
          _
        // Predicated region
        $region17: #{tpu_custom_call.1} parent=11 // pred_check
          %p152 = pneg %p102
        $region18: #{tpu_custom_call.1} parent=11 // pred_check_branch
          %154 = sbr.rel (%p152) target = $region20
        $region19: #{tpu_custom_call.1} parent=11 // pred_region
          %p155 = scmp.lt.s32.totalorder %s22, 0
          %s156 = scalar_select %p155, %s22, 0
          %s157 = scalar_lea.vmem %s2, %s156
        $region20: #{tpu_custom_call.1} parent=11 // pred_fallthru
          _
      $region12: #{tpu_custom_call.1} parent=5 // pred_fallthru
        _
      %p158 = scmp.lt.s32.totalorder %s12, 4
      // Predicated region
      $region21: #{tpu_custom_call.1} parent=5 // pred_check
        %p159 = pneg %p158
      $region22: #{tpu_custom_call.1} parent=5 // pred_check_branch
        %161 = sbr.rel (%p159) target = $region24
      $region23: #{tpu_custom_call.1} parent=5 // pred_region
        // Predicated region
        $region25: #{tpu_custom_call.1} parent=23 // pred_check
          %p162 = pneg %p44
        $region26: #{tpu_custom_call.1} parent=23 // pred_check_branch
          %164 = sbr.rel (%p162) target = $region28
        $region27: #{tpu_custom_call.1} parent=23 // pred_region
          %s165 = smul.u32 64, %s19
          %p166 = scmp.lt.s32.totalorder %s165, 255
          %s167 = scalar_select %p166, %s165, 255
          %s168 = smul.addr %s167, 4
          %s169 = scalar_lea.vmem %s0, %s168
          %s170 = smul.u32 64, %s19
        $region28: #{tpu_custom_call.1} parent=23 // pred_fallthru
          _
      $region24: #{tpu_custom_call.1} parent=5 // pred_fallthru
        _
      %p171 = scmp.le.s32.totalorder 1, %s12
      %p172 = scmp.lt.s32.totalorder %s12, 5
      %p173 = pnand %p171, %p172
      %p174 = pneg %p173
      // Predicated region
      $region29: #{tpu_custom_call.1} parent=5 // pred_check
        _
      $region30: #{tpu_custom_call.1} parent=5 // pred_check_branch
        %176 = sbr.rel (%p173) target = $region32
      $region31: #{tpu_custom_call.1} parent=5 // pred_region
        %s177 = ssub.s32 %s12, 1
        %s178 = smul.u32 64, %s21
        %p179 = scmp.lt.s32.totalorder %s178, 255
        %s180 = scalar_select %p179, %s178, 255
        %s181 = smul.addr %s180, 4
        %s182 = scalar_lea.vmem %s0, %s181
        %p183 = pneg %p50
        %p184 = pneg %p47
        %p185 = scmp.lt.s32.totalorder %s22, 0
        %s186 = scalar_select %p185, %s22, 0
        %s187 = smul.addr %s186, 4
        %s188 = scalar_lea.vmem %s1, %s187
        %p189 = pneg %p76
        %p190 = pneg %p73
        %p191 = scmp.lt.s32.totalorder %s22, 0
        %s192 = scalar_select %p191, %s22, 0
        %s193 = scalar_lea.vmem %s2, %s192
        %p194 = pneg %p102
        %p195 = pneg %p99
        %p196 = pneg %p130
        %p197 = pneg %p127
        %s198 = sand.u32 %s117, 1
        %s199 = scalar_lea.sflag [#allocation3], %s198
        %s200 = sand.u32 %s117, 1
        %s201 = smul.addr %s200, 256
        %s202 = scalar_lea.vmem [#allocation2], %s201
        %s203 = smul.u32 64, %s21
        %p204 = scmp.lt.s32.totalorder %s203, 255
        %s205 = scalar_select %p204, %s203, 255
        %s206 = smul.addr %s205, 4
        %s207 = scalar_lea.vmem %s0, %s206
        %s208 = smul.u32 64, %s21
        %p209 = scmp.lt.s32.totalorder %s22, 0
        %s210 = scalar_select %p209, %s22, 0
        %s211 = smul.addr %s210, 4
        %s212 = scalar_lea.vmem %s1, %s211
        %p213 = scmp.lt.s32.totalorder %s22, 0
        %s214 = scalar_select %p213, %s22, 0
        %s215 = scalar_lea.vmem %s2, %s214
        %s216 = smul.u32 64, %s21
        %v218 = vld [vmem:[%s207] sm:$0xf]
        %v219 = vld [vmem:[%s207 + $0x4] sm:$0xf]
        %v220 = vld [vmem:[%s207 + $0x8] sm:$0xf]
        %v221 = vld [vmem:[%s207 + $0xc] sm:$0xf]
        %v222 = vld [vmem:[%s207 + $0x10] sm:$0xf]
        %v223 = vld [vmem:[%s207 + $0x14] sm:$0xf]
        %v224 = vld [vmem:[%s207 + $0x18] sm:$0xf]
        %v225 = vld [vmem:[%s207 + $0x1c] sm:$0xf]
        %v226 = vld [vmem:[%s207 + $0x20] sm:$0xf]
        %v227 = vld [vmem:[%s207 + $0x24] sm:$0xf]
        %v228 = vld [vmem:[%s207 + $0x28] sm:$0xf]
        %v229 = vld [vmem:[%s207 + $0x2c] sm:$0xf]
        %v230 = vld [vmem:[%s207 + $0x30] sm:$0xf]
        %v231 = vld [vmem:[%s207 + $0x34] sm:$0xf]
        %v232 = vld [vmem:[%s207 + $0x38] sm:$0xf]
        %v233 = vld [vmem:[%s207 + $0x3c] sm:$0xf]
        %v234 = vld [vmem:[%s207 + $0x40] sm:$0xf]
        %v235 = vld [vmem:[%s207 + $0x44] sm:$0xf]
        %v236 = vld [vmem:[%s207 + $0x48] sm:$0xf]
        %v237 = vld [vmem:[%s207 + $0x4c] sm:$0xf]
        %v238 = vld [vmem:[%s207 + $0x50] sm:$0xf]
        %v239 = vld [vmem:[%s207 + $0x54] sm:$0xf]
        %v240 = vld [vmem:[%s207 + $0x58] sm:$0xf]
        %v241 = vld [vmem:[%s207 + $0x5c] sm:$0xf]
        %v242 = vld [vmem:[%s207 + $0x60] sm:$0xf]
        %v243 = vld [vmem:[%s207 + $0x64] sm:$0xf]
        %v244 = vld [vmem:[%s207 + $0x68] sm:$0xf]
        %v245 = vld [vmem:[%s207 + $0x6c] sm:$0xf]
        %v246 = vld [vmem:[%s207 + $0x70] sm:$0xf]
        %v247 = vld [vmem:[%s207 + $0x74] sm:$0xf]
        %v248 = vld [vmem:[%s207 + $0x78] sm:$0xf]
        %v249 = vld [vmem:[%s207 + $0x7c] sm:$0xf]
        %v250 = vld [vmem:[%s207 + $0x80] sm:$0xf]
        %v251 = vld [vmem:[%s207 + $0x84] sm:$0xf]
        %v252 = vld [vmem:[%s207 + $0x88] sm:$0xf]
        %v253 = vld [vmem:[%s207 + $0x8c] sm:$0xf]
        %v254 = vld [vmem:[%s207 + $0x90] sm:$0xf]
        %v255 = vld [vmem:[%s207 + $0x94] sm:$0xf]
        %v256 = vld [vmem:[%s207 + $0x98] sm:$0xf]
        %v257 = vld [vmem:[%s207 + $0x9c] sm:$0xf]
        %v258 = vld [vmem:[%s207 + $0xa0] sm:$0xf]
        %v259 = vld [vmem:[%s207 + $0xa4] sm:$0xf]
        %v260 = vld [vmem:[%s207 + $0xa8] sm:$0xf]
        %v261 = vld [vmem:[%s207 + $0xac] sm:$0xf]
        %v262 = vld [vmem:[%s207 + $0xb0] sm:$0xf]
        %v263 = vld [vmem:[%s207 + $0xb4] sm:$0xf]
        %v264 = vld [vmem:[%s207 + $0xb8] sm:$0xf]
        %v265 = vld [vmem:[%s207 + $0xbc] sm:$0xf]
        %v266 = vld [vmem:[%s207 + $0xc0] sm:$0xf]
        %v267 = vld [vmem:[%s207 + $0xc4] sm:$0xf]
        %v268 = vld [vmem:[%s207 + $0xc8] sm:$0xf]
        %v269 = vld [vmem:[%s207 + $0xcc] sm:$0xf]
        %v270 = vld [vmem:[%s207 + $0xd0] sm:$0xf]
        %v271 = vld [vmem:[%s207 + $0xd4] sm:$0xf]
        %v272 = vld [vmem:[%s207 + $0xd8] sm:$0xf]
        %v273 = vld [vmem:[%s207 + $0xdc] sm:$0xf]
        %v274 = vld [vmem:[%s207 + $0xe0] sm:$0xf]
        %v275 = vld [vmem:[%s207 + $0xe4] sm:$0xf]
        %v276 = vld [vmem:[%s207 + $0xe8] sm:$0xf]
        %v277 = vld [vmem:[%s207 + $0xec] sm:$0xf]
        %v278 = vld [vmem:[%s207 + $0xf0] sm:$0xf]
        %v279 = vld [vmem:[%s207 + $0xf4] sm:$0xf]
        %v280 = vld [vmem:[%s207 + $0xf8] sm:$0xf]
        %v281 = vld [vmem:[%s207 + $0xfc] sm:$0xf]
        %v282 = vld [vmem:[%s212] sm:$0xf]
        %v283 = vld [vmem:[%s212 + $0x4] sm:$0xf]
        %v284 = vld [vmem:[%s212 + $0x8] sm:$0xf]
        %v285 = vld [vmem:[%s212 + $0xc] sm:$0x3]
        %v286 = vld [vmem:[%s215] sm:$0x1]
        %v288 = vlaneseq
        %v289 = vshrl.u32 %v288, 7
        %v290 = vsub.s32 0, %v289
        %v291 = vrot.slane %v286, %v290
        %v357 = vunpack.c.l.b16 %v218
        %v358 = vunpack.c.l.b16 %v219
        %v359 = vunpack.c.l.b16 %v220
        %v360 = vunpack.c.l.b16 %v221
        %v361 = vunpack.c.l.b16 %v222
        %v362 = vunpack.c.l.b16 %v223
        %v363 = vunpack.c.l.b16 %v224
        %v364 = vunpack.c.l.b16 %v225
        %v365 = vunpack.c.l.b16 %v226
        %v366 = vunpack.c.l.b16 %v227
        %v367 = vunpack.c.l.b16 %v228
        %v368 = vunpack.c.l.b16 %v229
        %v369 = vunpack.c.l.b16 %v230
        %v370 = vunpack.c.l.b16 %v231
        %v371 = vunpack.c.l.b16 %v232
        %v372 = vunpack.c.l.b16 %v233
        %v373 = vunpack.c.l.b16 %v234
        %v374 = vunpack.c.l.b16 %v235
        %v375 = vunpack.c.l.b16 %v236
        %v376 = vunpack.c.l.b16 %v237
        %v377 = vunpack.c.l.b16 %v238
        %v378 = vunpack.c.l.b16 %v239
        %v379 = vunpack.c.l.b16 %v240
        %v380 = vunpack.c.l.b16 %v241
        %v381 = vunpack.c.l.b16 %v242
        %v382 = vunpack.c.l.b16 %v243
        %v383 = vunpack.c.l.b16 %v244
        %v384 = vunpack.c.l.b16 %v245
        %v385 = vunpack.c.l.b16 %v246
        %v386 = vunpack.c.l.b16 %v247
        %v387 = vunpack.c.l.b16 %v248
        %v388 = vunpack.c.l.b16 %v249
        %v389 = vunpack.c.l.b16 %v250
        %v390 = vunpack.c.l.b16 %v251
        %v391 = vunpack.c.l.b16 %v252
        %v392 = vunpack.c.l.b16 %v253
        %v393 = vunpack.c.l.b16 %v254
        %v394 = vunpack.c.l.b16 %v255
        %v395 = vunpack.c.l.b16 %v256
        %v396 = vunpack.c.l.b16 %v257
        %v397 = vunpack.c.l.b16 %v258
        %v398 = vunpack.c.l.b16 %v259
        %v399 = vunpack.c.l.b16 %v260
        %v400 = vunpack.c.l.b16 %v261
        %v401 = vunpack.c.l.b16 %v262
        %v402 = vunpack.c.l.b16 %v263
        %v403 = vunpack.c.l.b16 %v264
        %v404 = vunpack.c.l.b16 %v265
        %v405 = vunpack.c.l.b16 %v266
        %v406 = vunpack.c.l.b16 %v267
        %v407 = vunpack.c.l.b16 %v268
        %v408 = vunpack.c.l.b16 %v269
        %v409 = vunpack.c.l.b16 %v270
        %v410 = vunpack.c.l.b16 %v271
        %v411 = vunpack.c.l.b16 %v272
        %v412 = vunpack.c.l.b16 %v273
        %v413 = vunpack.c.l.b16 %v274
        %v414 = vunpack.c.l.b16 %v275
        %v415 = vunpack.c.l.b16 %v276
        %v416 = vunpack.c.l.b16 %v277
        %v417 = vunpack.c.l.b16 %v278
        %v418 = vunpack.c.l.b16 %v279
        %v419 = vunpack.c.l.b16 %v280
        %v420 = vunpack.c.l.b16 %v281
        %v421 = vpack.c.b16 %v358, %v357
        %v422 = vpack.c.b16 %v360, %v359
        %v423 = vpack.c.b16 %v362, %v361
        %v424 = vpack.c.b16 %v364, %v363
        %v425 = vpack.c.b16 %v366, %v365
        %v426 = vpack.c.b16 %v368, %v367
        %v427 = vpack.c.b16 %v370, %v369
        %v428 = vpack.c.b16 %v372, %v371
        %v429 = vpack.c.b16 %v374, %v373
        %v430 = vpack.c.b16 %v376, %v375
        %v431 = vpack.c.b16 %v378, %v377
        %v432 = vpack.c.b16 %v380, %v379
        %v433 = vpack.c.b16 %v382, %v381
        %v434 = vpack.c.b16 %v384, %v383
        %v435 = vpack.c.b16 %v386, %v385
        %v436 = vpack.c.b16 %v388, %v387
        %v437 = vpack.c.b16 %v390, %v389
        %v438 = vpack.c.b16 %v392, %v391
        %v439 = vpack.c.b16 %v394, %v393
        %v440 = vpack.c.b16 %v396, %v395
        %v441 = vpack.c.b16 %v398, %v397
        %v442 = vpack.c.b16 %v400, %v399
        %v443 = vpack.c.b16 %v402, %v401
        %v444 = vpack.c.b16 %v404, %v403
        %v445 = vpack.c.b16 %v406, %v405
        %v446 = vpack.c.b16 %v408, %v407
        %v447 = vpack.c.b16 %v410, %v409
        %v448 = vpack.c.b16 %v412, %v411
        %v449 = vpack.c.b16 %v414, %v413
        %v450 = vpack.c.b16 %v416, %v415
        %v451 = vpack.c.b16 %v418, %v417
        %v452 = vpack.c.b16 %v420, %v419
        %v457 = vunpack.c.l.b16 %v282
        %v458 = vunpack.c.l.b16 %v283
        %v459 = vunpack.c.l.b16 %v284
        %v460 = vunpack.c.l.b16 %v285
        %v461 = vpack.c.b16 %v458, %v457
        %v462 = vpack.c.b16 %v460, %v459
        %vm464 = vcmask 220160
        %v466 = vsel %vm464, %v421, 0
        %v469 = vsel %vm464, %v422, 0
        %v472 = vsel %vm464, %v423, 0
        %v475 = vsel %vm464, %v424, 0
        %v478 = vsel %vm464, %v425, 0
        %v481 = vsel %vm464, %v426, 0
        %v484 = vsel %vm464, %v427, 0
        %v487 = vsel %vm464, %v428, 0
        %v490 = vsel %vm464, %v429, 0
        %v493 = vsel %vm464, %v430, 0
        %v496 = vsel %vm464, %v431, 0
        %v499 = vsel %vm464, %v432, 0
        %v502 = vsel %vm464, %v433, 0
        %v505 = vsel %vm464, %v434, 0
        %v508 = vsel %vm464, %v435, 0
        %v511 = vsel %vm464, %v436, 0
        %v514 = vsel %vm464, %v437, 0
        %v517 = vsel %vm464, %v438, 0
        %v520 = vsel %vm464, %v439, 0
        %v523 = vsel %vm464, %v440, 0
        %v526 = vsel %vm464, %v441, 0
        %v529 = vsel %vm464, %v442, 0
        %v532 = vsel %vm464, %v443, 0
        %v535 = vsel %vm464, %v444, 0
        %v538 = vsel %vm464, %v445, 0
        %v541 = vsel %vm464, %v446, 0
        %v544 = vsel %vm464, %v447, 0
        %v547 = vsel %vm464, %v448, 0
        %v550 = vsel %vm464, %v449, 0
        %v553 = vsel %vm464, %v450, 0
        %v556 = vsel %vm464, %v451, 0
        %v559 = vsel %vm464, %v452, 0
        %vm561 = vcmask 1044480
        %vm562 = vcmask 1045504
        %v563 = vsel %vm561, 4294967295, 65535
        %v564 = vsel %vm562, %v563, 0
        %v566 = vand.u32 %v462, %v564
        %568 = vmatprep.subr.bf16.mxu0 0
        %569 = vmatpush1.bf16.msra.mxu0 %v461
        %570 = vmatprep.subr.bf16.mxu0 0
        %571 = vmatpush1.bf16.msra.mxu0 %v566
        %572 = vmatprep.subr.bf16.mxu0 0
        %573 = vmatpush1.bf16.msra.mxu0 0
        %574 = vmatprep.subr.bf16.mxu0 0
        %575 = vmatpush1.bf16.msra.mxu0 0
        %576 = vmatprep.subr.bf16.mxu0 0
        %577 = vmatpush1.bf16.msra.mxu0 0
        %578 = vmatprep.subr.bf16.mxu0 0
        %579 = vmatpush1.bf16.msra.mxu0 0
        %580 = vmatprep.subr.bf16.mxu0 0
        %581 = vmatpush1.bf16.msra.mxu0 0
        %582 = vmatprep.subr.bf16.mxu0 0
        %583 = vmatpush1.bf16.msra.mxu0 0
        %584 = vmatprep.subr.bf16.mxu0 0
        %585 = vmatpush1.bf16.msra.mxu0 0
        %586 = vmatprep.subr.bf16.mxu0 0
        %587 = vmatpush1.bf16.msra.mxu0 0
        %588 = vmatprep.subr.bf16.mxu0 0
        %589 = vmatpush1.bf16.msra.mxu0 0
        %590 = vmatprep.subr.bf16.mxu0 0
        %591 = vmatpush1.bf16.msra.mxu0 0
        %592 = vmatprep.subr.bf16.mxu0 0
        %593 = vmatpush1.bf16.msra.mxu0 0
        %594 = vmatprep.subr.bf16.mxu0 0
        %595 = vmatpush1.bf16.msra.mxu0 0
        %596 = vmatprep.subr.bf16.mxu0 0
        %597 = vmatpush1.bf16.msra.mxu0 0
        %598 = vmatprep.subr.bf16.mxu0 0
        %599 = vmatpush1.bf16.msra.mxu0 0
        %600 = vmatprep.mubr.bf16.mxu0 0
        %601 = vmatmul.mubr.bf16.gmra.mrb[0].mxu0 %v466
        %v602 = vpop.f32.mrb[0].mxu0
        %v603 = vadd.f32 %v291, %v602
        %v604 = vpop.f32.mrb[0].mxu0
        %v605 = vpop.f32.mrb[0].mxu0
        %v606 = vadd.f32 %v291, %v605
        %v607 = vpop.f32.mrb[0].mxu0
        %608 = vmatprep.mubr.bf16.mxu0 0
        %609 = vmatmul.mubr.bf16.gmra.mrb[0].mxu0 %v469
        %v610 = vpop.f32.mrb[0].mxu0
        %v611 = vadd.f32 %v291, %v610
        %v612 = vpop.f32.mrb[0].mxu0
        %v613 = vpop.f32.mrb[0].mxu0
        %v614 = vadd.f32 %v291, %v613
        %v615 = vpop.f32.mrb[0].mxu0
        %616 = vmatprep.mubr.bf16.mxu0 0
        %617 = vmatmul.mubr.bf16.gmra.mrb[0].mxu0 %v472
        %v618 = vpop.f32.mrb[0].mxu0
        %v619 = vadd.f32 %v291, %v618
        %v620 = vpop.f32.mrb[0].mxu0
        %v621 = vpop.f32.mrb[0].mxu0
        %v622 = vadd.f32 %v291, %v621
        %v623 = vpop.f32.mrb[0].mxu0
        %624 = vmatprep.mubr.bf16.mxu0 0
        %625 = vmatmul.mubr.bf16.gmra.mrb[0].mxu0 %v475
        %v626 = vpop.f32.mrb[0].mxu0
        %v627 = vadd.f32 %v291, %v626
        %v628 = vpop.f32.mrb[0].mxu0
        %v629 = vpop.f32.mrb[0].mxu0
        %v630 = vadd.f32 %v291, %v629
        %v631 = vpop.f32.mrb[0].mxu0
        %632 = vmatprep.mubr.bf16.mxu0 0
        %633 = vmatmul.mubr.bf16.gmra.mrb[0].mxu0 %v478
        %v634 = vpop.f32.mrb[0].mxu0
        %v635 = vadd.f32 %v291, %v634
        %v636 = vpop.f32.mrb[0].mxu0
        %v637 = vpop.f32.mrb[0].mxu0
        %v638 = vadd.f32 %v291, %v637
        %v639 = vpop.f32.mrb[0].mxu0
        %640 = vmatprep.mubr.bf16.mxu0 0
        %641 = vmatmul.mubr.bf16.gmra.mrb[0].mxu0 %v481
        %v642 = vpop.f32.mrb[0].mxu0
        %v643 = vadd.f32 %v291, %v642
        %v644 = vpop.f32.mrb[0].mxu0
        %v645 = vpop.f32.mrb[0].mxu0
        %v646 = vadd.f32 %v291, %v645
        %v647 = vpop.f32.mrb[0].mxu0
        %648 = vmatprep.mubr.bf16.mxu0 0
        %649 = vmatmul.mubr.bf16.gmra.mrb[0].mxu0 %v484
        %v650 = vpop.f32.mrb[0].mxu0
        %v651 = vadd.f32 %v291, %v650
        %v652 = vpop.f32.mrb[0].mxu0
        %v653 = vpop.f32.mrb[0].mxu0
        %v654 = vadd.f32 %v291, %v653
        %v655 = vpop.f32.mrb[0].mxu0
        %656 = vmatprep.mubr.bf16.mxu0 0
        %657 = vmatmul.mubr.bf16.gmra.mrb[0].mxu0 %v487
        %v658 = vpop.f32.mrb[0].mxu0
        %v659 = vadd.f32 %v291, %v658
        %v660 = vpop.f32.mrb[0].mxu0
        %v661 = vpop.f32.mrb[0].mxu0
        %v662 = vadd.f32 %v291, %v661
        %v663 = vpop.f32.mrb[0].mxu0
        %664 = vmatprep.mubr.bf16.mxu0 0
        %665 = vmatmul.mubr.bf16.gmra.mrb[0].mxu0 %v490
        %v666 = vpop.f32.mrb[0].mxu0
        %v667 = vadd.f32 %v291, %v666
        %v668 = vpop.f32.mrb[0].mxu0
        %v669 = vpop.f32.mrb[0].mxu0
        %v670 = vadd.f32 %v291, %v669
        %v671 = vpop.f32.mrb[0].mxu0
        %672 = vmatprep.mubr.bf16.mxu0 0
        %673 = vmatmul.mubr.bf16.gmra.mrb[0].mxu0 %v493
        %v674 = vpop.f32.mrb[0].mxu0
        %v675 = vadd.f32 %v291, %v674
        %v676 = vpop.f32.mrb[0].mxu0
        %v677 = vpop.f32.mrb[0].mxu0
        %v678 = vadd.f32 %v291, %v677
        %v679 = vpop.f32.mrb[0].mxu0
        %680 = vmatprep.mubr.bf16.mxu0 0
        %681 = vmatmul.mubr.bf16.gmra.mrb[0].mxu0 %v496
        %v682 = vpop.f32.mrb[0].mxu0
        %v683 = vadd.f32 %v291, %v682
        %v684 = vpop.f32.mrb[0].mxu0
        %v685 = vpop.f32.mrb[0].mxu0
        %v686 = vadd.f32 %v291, %v685
        %v687 = vpop.f32.mrb[0].mxu0
        %688 = vmatprep.mubr.bf16.mxu0 0
        %689 = vmatmul.mubr.bf16.gmra.mrb[0].mxu0 %v499
        %v690 = vpop.f32.mrb[0].mxu0
        %v691 = vadd.f32 %v291, %v690
        %v692 = vpop.f32.mrb[0].mxu0
        %v693 = vpop.f32.mrb[0].mxu0
        %v694 = vadd.f32 %v291, %v693
        %v695 = vpop.f32.mrb[0].mxu0
        %696 = vmatprep.mubr.bf16.mxu0 0
        %697 = vmatmul.mubr.bf16.gmra.mrb[0].mxu0 %v502
        %v698 = vpop.f32.mrb[0].mxu0
        %v699 = vadd.f32 %v291, %v698
        %v700 = vpop.f32.mrb[0].mxu0
        %v701 = vpop.f32.mrb[0].mxu0
        %v702 = vadd.f32 %v291, %v701
        %v703 = vpop.f32.mrb[0].mxu0
        %704 = vmatprep.mubr.bf16.mxu0 0
        %705 = vmatmul.mubr.bf16.gmra.mrb[0].mxu0 %v505
        %v706 = vpop.f32.mrb[0].mxu0
        %v707 = vadd.f32 %v291, %v706
        %v708 = vpop.f32.mrb[0].mxu0
        %v709 = vpop.f32.mrb[0].mxu0
        %v710 = vadd.f32 %v291, %v709
        %v711 = vpop.f32.mrb[0].mxu0
        %712 = vmatprep.mubr.bf16.mxu0 0
        %713 = vmatmul.mubr.bf16.gmra.mrb[0].mxu0 %v508
        %v714 = vpop.f32.mrb[0].mxu0
        %v715 = vadd.f32 %v291, %v714
        %v716 = vpop.f32.mrb[0].mxu0
        %v717 = vpop.f32.mrb[0].mxu0
        %v718 = vadd.f32 %v291, %v717
        %v719 = vpop.f32.mrb[0].mxu0
        %720 = vmatprep.mubr.bf16.mxu0 0
        %721 = vmatmul.mubr.bf16.gmra.mrb[0].mxu0 %v511
        %v722 = vpop.f32.mrb[0].mxu0
        %v723 = vadd.f32 %v291, %v722
        %v724 = vpop.f32.mrb[0].mxu0
        %v725 = vpop.f32.mrb[0].mxu0
        %v726 = vadd.f32 %v291, %v725
        %v727 = vpop.f32.mrb[0].mxu0
        %728 = vmatprep.mubr.bf16.mxu0 0
        %729 = vmatmul.mubr.bf16.gmra.mrb[0].mxu0 %v514
        %v730 = vpop.f32.mrb[0].mxu0
        %v731 = vadd.f32 %v291, %v730
        %v732 = vpop.f32.mrb[0].mxu0
        %v733 = vpop.f32.mrb[0].mxu0
        %v734 = vadd.f32 %v291, %v733
        %v735 = vpop.f32.mrb[0].mxu0
        %736 = vmatprep.mubr.bf16.mxu0 0
        %737 = vmatmul.mubr.bf16.gmra.mrb[0].mxu0 %v517
        %v738 = vpop.f32.mrb[0].mxu0
        %v739 = vadd.f32 %v291, %v738
        %v740 = vpop.f32.mrb[0].mxu0
        %v741 = vpop.f32.mrb[0].mxu0
        %v742 = vadd.f32 %v291, %v741
        %v743 = vpop.f32.mrb[0].mxu0
        %744 = vmatprep.mubr.bf16.mxu0 0
        %745 = vmatmul.mubr.bf16.gmra.mrb[0].mxu0 %v520
        %v746 = vpop.f32.mrb[0].mxu0
        %v747 = vadd.f32 %v291, %v746
        %v748 = vpop.f32.mrb[0].mxu0
        %v749 = vpop.f32.mrb[0].mxu0
        %v750 = vadd.f32 %v291, %v749
        %v751 = vpop.f32.mrb[0].mxu0
        %752 = vmatprep.mubr.bf16.mxu0 0
        %753 = vmatmul.mubr.bf16.gmra.mrb[0].mxu0 %v523
        %v754 = vpop.f32.mrb[0].mxu0
        %v755 = vadd.f32 %v291, %v754
        %v756 = vpop.f32.mrb[0].mxu0
        %v757 = vpop.f32.mrb[0].mxu0
        %v758 = vadd.f32 %v291, %v757
        %v759 = vpop.f32.mrb[0].mxu0
        %760 = vmatprep.mubr.bf16.mxu0 0
        %761 = vmatmul.mubr.bf16.gmra.mrb[0].mxu0 %v526
        %v762 = vpop.f32.mrb[0].mxu0
        %v763 = vadd.f32 %v291, %v762
        %v764 = vpop.f32.mrb[0].mxu0
        %v765 = vpop.f32.mrb[0].mxu0
        %v766 = vadd.f32 %v291, %v765
        %v767 = vpop.f32.mrb[0].mxu0
        %768 = vmatprep.mubr.bf16.mxu0 0
        %769 = vmatmul.mubr.bf16.gmra.mrb[0].mxu0 %v529
        %v770 = vpop.f32.mrb[0].mxu0
        %v771 = vadd.f32 %v291, %v770
        %v772 = vpop.f32.mrb[0].mxu0
        %v773 = vpop.f32.mrb[0].mxu0
        %v774 = vadd.f32 %v291, %v773
        %v775 = vpop.f32.mrb[0].mxu0
        %776 = vmatprep.mubr.bf16.mxu0 0
        %777 = vmatmul.mubr.bf16.gmra.mrb[0].mxu0 %v532
        %v778 = vpop.f32.mrb[0].mxu0
        %v779 = vadd.f32 %v291, %v778
        %v780 = vpop.f32.mrb[0].mxu0
        %v781 = vpop.f32.mrb[0].mxu0
        %v782 = vadd.f32 %v291, %v781
        %v783 = vpop.f32.mrb[0].mxu0
        %784 = vmatprep.mubr.bf16.mxu0 0
        %785 = vmatmul.mubr.bf16.gmra.mrb[0].mxu0 %v535
        %v786 = vpop.f32.mrb[0].mxu0
        %v787 = vadd.f32 %v291, %v786
        %v788 = vpop.f32.mrb[0].mxu0
        %v789 = vpop.f32.mrb[0].mxu0
        %v790 = vadd.f32 %v291, %v789
        %v791 = vpop.f32.mrb[0].mxu0
        %792 = vmatprep.mubr.bf16.mxu0 0
        %793 = vmatmul.mubr.bf16.gmra.mrb[0].mxu0 %v538
        %v794 = vpop.f32.mrb[0].mxu0
        %v795 = vadd.f32 %v291, %v794
        %v796 = vpop.f32.mrb[0].mxu0
        %v797 = vpop.f32.mrb[0].mxu0
        %v798 = vadd.f32 %v291, %v797
        %v799 = vpop.f32.mrb[0].mxu0
        %800 = vmatprep.mubr.bf16.mxu0 0
        %801 = vmatmul.mubr.bf16.gmra.mrb[0].mxu0 %v541
        %v802 = vpop.f32.mrb[0].mxu0
        %v803 = vadd.f32 %v291, %v802
        %v804 = vpop.f32.mrb[0].mxu0
        %v805 = vpop.f32.mrb[0].mxu0
        %v806 = vadd.f32 %v291, %v805
        %v807 = vpop.f32.mrb[0].mxu0
        %808 = vmatprep.mubr.bf16.mxu0 0
        %809 = vmatmul.mubr.bf16.gmra.mrb[0].mxu0 %v544
        %v810 = vpop.f32.mrb[0].mxu0
        %v811 = vadd.f32 %v291, %v810
        %v812 = vpop.f32.mrb[0].mxu0
        %v813 = vpop.f32.mrb[0].mxu0
        %v814 = vadd.f32 %v291, %v813
        %v815 = vpop.f32.mrb[0].mxu0
        %816 = vmatprep.mubr.bf16.mxu0 0
        %817 = vmatmul.mubr.bf16.gmra.mrb[0].mxu0 %v547
        %v818 = vpop.f32.mrb[0].mxu0
        %v819 = vadd.f32 %v291, %v818
        %v820 = vpop.f32.mrb[0].mxu0
        %v821 = vpop.f32.mrb[0].mxu0
        %v822 = vadd.f32 %v291, %v821
        %v823 = vpop.f32.mrb[0].mxu0
        %824 = vmatprep.mubr.bf16.mxu0 0
        %825 = vmatmul.mubr.bf16.gmra.mrb[0].mxu0 %v550
        %v826 = vpop.f32.mrb[0].mxu0
        %v827 = vadd.f32 %v291, %v826
        %v828 = vpop.f32.mrb[0].mxu0
        %v829 = vpop.f32.mrb[0].mxu0
        %v830 = vadd.f32 %v291, %v829
        %v831 = vpop.f32.mrb[0].mxu0
        %832 = vmatprep.mubr.bf16.mxu0 0
        %833 = vmatmul.mubr.bf16.gmra.mrb[0].mxu0 %v553
        %v834 = vpop.f32.mrb[0].mxu0
        %v835 = vadd.f32 %v291, %v834
        %v836 = vpop.f32.mrb[0].mxu0
        %v837 = vpop.f32.mrb[0].mxu0
        %v838 = vadd.f32 %v291, %v837
        %v839 = vpop.f32.mrb[0].mxu0
        %840 = vmatprep.mubr.bf16.mxu0 0
        %841 = vmatmul.mubr.bf16.gmra.mrb[0].mxu0 %v556
        %v842 = vpop.f32.mrb[0].mxu0
        %v843 = vadd.f32 %v291, %v842
        %v844 = vpop.f32.mrb[0].mxu0
        %v845 = vpop.f32.mrb[0].mxu0
        %v846 = vadd.f32 %v291, %v845
        %v847 = vpop.f32.mrb[0].mxu0
        %848 = vmatprep.mubr.bf16.mxu0 0
        %849 = vmatmul.mubr.bf16.gmra.mrb[0].mxu0 %v559
        %v850 = vpop.f32.mrb[0].mxu0
        %v851 = vadd.f32 %v291, %v850
        %v852 = vpop.f32.mrb[0].mxu0
        %v853 = vpop.f32.mrb[0].mxu0
        %v854 = vadd.f32 %v291, %v853
        %v855 = vpop.f32.mrb[0].mxu0
        %856 = vdwg.mxu0
        %vm857 = vcmp.gt.f32.partialorder %v603, 0.0
        %vm858 = vcmp.gt.f32.partialorder %v606, 0.0
        %vm859 = vcmp.gt.f32.partialorder %v611, 0.0
        %vm860 = vcmp.gt.f32.partialorder %v614, 0.0
        %vm861 = vcmp.gt.f32.partialorder %v619, 0.0
        %vm862 = vcmp.gt.f32.partialorder %v622, 0.0
        %vm863 = vcmp.gt.f32.partialorder %v627, 0.0
        %vm864 = vcmp.gt.f32.partialorder %v630, 0.0
        %vm865 = vcmp.gt.f32.partialorder %v635, 0.0
        %vm866 = vcmp.gt.f32.partialorder %v638, 0.0
        %vm867 = vcmp.gt.f32.partialorder %v643, 0.0
        %vm868 = vcmp.gt.f32.partialorder %v646, 0.0
        %vm869 = vcmp.gt.f32.partialorder %v651, 0.0
        %vm870 = vcmp.gt.f32.partialorder %v654, 0.0
        %vm871 = vcmp.gt.f32.partialorder %v659, 0.0
        %vm872 = vcmp.gt.f32.partialorder %v662, 0.0
        %vm873 = vcmp.gt.f32.partialorder %v667, 0.0
        %vm874 = vcmp.gt.f32.partialorder %v670, 0.0
        %vm875 = vcmp.gt.f32.partialorder %v675, 0.0
        %vm876 = vcmp.gt.f32.partialorder %v678, 0.0
        %vm877 = vcmp.gt.f32.partialorder %v683, 0.0
        %vm878 = vcmp.gt.f32.partialorder %v686, 0.0
        %vm879 = vcmp.gt.f32.partialorder %v691, 0.0
        %vm880 = vcmp.gt.f32.partialorder %v694, 0.0
        %vm881 = vcmp.gt.f32.partialorder %v699, 0.0
        %vm882 = vcmp.gt.f32.partialorder %v702, 0.0
        %vm883 = vcmp.gt.f32.partialorder %v707, 0.0
        %vm884 = vcmp.gt.f32.partialorder %v710, 0.0
        %vm885 = vcmp.gt.f32.partialorder %v715, 0.0
        %vm886 = vcmp.gt.f32.partialorder %v718, 0.0
        %vm887 = vcmp.gt.f32.partialorder %v723, 0.0
        %vm888 = vcmp.gt.f32.partialorder %v726, 0.0
        %vm889 = vcmp.gt.f32.partialorder %v731, 0.0
        %vm890 = vcmp.gt.f32.partialorder %v734, 0.0
        %vm891 = vcmp.gt.f32.partialorder %v739, 0.0
        %vm892 = vcmp.gt.f32.partialorder %v742, 0.0
        %vm893 = vcmp.gt.f32.partialorder %v747, 0.0
        %vm894 = vcmp.gt.f32.partialorder %v750, 0.0
        %vm895 = vcmp.gt.f32.partialorder %v755, 0.0
        %vm896 = vcmp.gt.f32.partialorder %v758, 0.0
        %vm897 = vcmp.gt.f32.partialorder %v763, 0.0
        %vm898 = vcmp.gt.f32.partialorder %v766, 0.0
        %vm899 = vcmp.gt.f32.partialorder %v771, 0.0
        %vm900 = vcmp.gt.f32.partialorder %v774, 0.0
        %vm901 = vcmp.gt.f32.partialorder %v779, 0.0
        %vm902 = vcmp.gt.f32.partialorder %v782, 0.0
        %vm903 = vcmp.gt.f32.partialorder %v787, 0.0
        %vm904 = vcmp.gt.f32.partialorder %v790, 0.0
        %vm905 = vcmp.gt.f32.partialorder %v795, 0.0
        %vm906 = vcmp.gt.f32.partialorder %v798, 0.0
        %vm907 = vcmp.gt.f32.partialorder %v803, 0.0
        %vm908 = vcmp.gt.f32.partialorder %v806, 0.0
        %vm909 = vcmp.gt.f32.partialorder %v811, 0.0
        %vm910 = vcmp.gt.f32.partialorder %v814, 0.0
        %vm911 = vcmp.gt.f32.partialorder %v819, 0.0
        %vm912 = vcmp.gt.f32.partialorder %v822, 0.0
        %vm913 = vcmp.gt.f32.partialorder %v827, 0.0
        %vm914 = vcmp.gt.f32.partialorder %v830, 0.0
        %vm915 = vcmp.gt.f32.partialorder %v835, 0.0
        %vm916 = vcmp.gt.f32.partialorder %v838, 0.0
        %vm917 = vcmp.gt.f32.partialorder %v843, 0.0
        %vm918 = vcmp.gt.f32.partialorder %v846, 0.0
        %vm919 = vcmp.gt.f32.partialorder %v851, 0.0
        %vm920 = vcmp.gt.f32.partialorder %v854, 0.0
        %v921 = vmul.f32 %v603, 0.1
        %v922 = vmul.f32 %v606, 0.1
        %v923 = vmul.f32 %v611, 0.1
        %v924 = vmul.f32 %v614, 0.1
        %v925 = vmul.f32 %v619, 0.1
        %v926 = vmul.f32 %v622, 0.1
        %v927 = vmul.f32 %v627, 0.1
        %v928 = vmul.f32 %v630, 0.1
        %v929 = vmul.f32 %v635, 0.1
        %v930 = vmul.f32 %v638, 0.1
        %v931 = vmul.f32 %v643, 0.1
        %v932 = vmul.f32 %v646, 0.1
        %v933 = vmul.f32 %v651, 0.1
        %v934 = vmul.f32 %v654, 0.1
        %v935 = vmul.f32 %v659, 0.1
        %v936 = vmul.f32 %v662, 0.1
        %v937 = vmul.f32 %v667, 0.1
        %v938 = vmul.f32 %v670, 0.1
        %v939 = vmul.f32 %v675, 0.1
        %v940 = vmul.f32 %v678, 0.1
        %v941 = vmul.f32 %v683, 0.1
        %v942 = vmul.f32 %v686, 0.1
        %v943 = vmul.f32 %v691, 0.1
        %v944 = vmul.f32 %v694, 0.1
        %v945 = vmul.f32 %v699, 0.1
        %v946 = vmul.f32 %v702, 0.1
        %v947 = vmul.f32 %v707, 0.1
        %v948 = vmul.f32 %v710, 0.1
        %v949 = vmul.f32 %v715, 0.1
        %v950 = vmul.f32 %v718, 0.1
        %v951 = vmul.f32 %v723, 0.1
        %v952 = vmul.f32 %v726, 0.1
        %v953 = vmul.f32 %v731, 0.1
        %v954 = vmul.f32 %v734, 0.1
        %v955 = vmul.f32 %v739, 0.1
        %v956 = vmul.f32 %v742, 0.1
        %v957 = vmul.f32 %v747, 0.1
        %v958 = vmul.f32 %v750, 0.1
        %v959 = vmul.f32 %v755, 0.1
        %v960 = vmul.f32 %v758, 0.1
        %v961 = vmul.f32 %v763, 0.1
        %v962 = vmul.f32 %v766, 0.1
        %v963 = vmul.f32 %v771, 0.1
        %v964 = vmul.f32 %v774, 0.1
        %v965 = vmul.f32 %v779, 0.1
        %v966 = vmul.f32 %v782, 0.1
        %v967 = vmul.f32 %v787, 0.1
        %v968 = vmul.f32 %v790, 0.1
        %v969 = vmul.f32 %v795, 0.1
        %v970 = vmul.f32 %v798, 0.1
        %v971 = vmul.f32 %v803, 0.1
        %v972 = vmul.f32 %v806, 0.1
        %v973 = vmul.f32 %v811, 0.1
        %v974 = vmul.f32 %v814, 0.1
        %v975 = vmul.f32 %v819, 0.1
        %v976 = vmul.f32 %v822, 0.1
        %v977 = vmul.f32 %v827, 0.1
        %v978 = vmul.f32 %v830, 0.1
        %v979 = vmul.f32 %v835, 0.1
        %v980 = vmul.f32 %v838, 0.1
        %v981 = vmul.f32 %v843, 0.1
        %v982 = vmul.f32 %v846, 0.1
        %v983 = vmul.f32 %v851, 0.1
        %v984 = vmul.f32 %v854, 0.1
        %v985 = vsel %vm857, %v603, %v921
        %v986 = vsel %vm858, %v606, %v922
        %v987 = vsel %vm859, %v611, %v923
        %v988 = vsel %vm860, %v614, %v924
        %v989 = vsel %vm861, %v619, %v925
        %v990 = vsel %vm862, %v622, %v926
        %v991 = vsel %vm863, %v627, %v927
        %v992 = vsel %vm864, %v630, %v928
        %v993 = vsel %vm865, %v635, %v929
        %v994 = vsel %vm866, %v638, %v930
        %v995 = vsel %vm867, %v643, %v931
        %v996 = vsel %vm868, %v646, %v932
        %v997 = vsel %vm869, %v651, %v933
        %v998 = vsel %vm870, %v654, %v934
        %v999 = vsel %vm871, %v659, %v935
        %v1000 = vsel %vm872, %v662, %v936
        %v1001 = vsel %vm873, %v667, %v937
        %v1002 = vsel %vm874, %v670, %v938
        %v1003 = vsel %vm875, %v675, %v939
        %v1004 = vsel %vm876, %v678, %v940
        %v1005 = vsel %vm877, %v683, %v941
        %v1006 = vsel %vm878, %v686, %v942
        %v1007 = vsel %vm879, %v691, %v943
        %v1008 = vsel %vm880, %v694, %v944
        %v1009 = vsel %vm881, %v699, %v945
        %v1010 = vsel %vm882, %v702, %v946
        %v1011 = vsel %vm883, %v707, %v947
        %v1012 = vsel %vm884, %v710, %v948
        %v1013 = vsel %vm885, %v715, %v949
        %v1014 = vsel %vm886, %v718, %v950
        %v1015 = vsel %vm887, %v723, %v951
        %v1016 = vsel %vm888, %v726, %v952
        %v1017 = vsel %vm889, %v731, %v953
        %v1018 = vsel %vm890, %v734, %v954
        %v1019 = vsel %vm891, %v739, %v955
        %v1020 = vsel %vm892, %v742, %v956
        %v1021 = vsel %vm893, %v747, %v957
        %v1022 = vsel %vm894, %v750, %v958
        %v1023 = vsel %vm895, %v755, %v959
        %v1024 = vsel %vm896, %v758, %v960
        %v1025 = vsel %vm897, %v763, %v961
        %v1026 = vsel %vm898, %v766, %v962
        %v1027 = vsel %vm899, %v771, %v963
        %v1028 = vsel %vm900, %v774, %v964
        %v1029 = vsel %vm901, %v779, %v965
        %v1030 = vsel %vm902, %v782, %v966
        %v1031 = vsel %vm903, %v787, %v967
        %v1032 = vsel %vm904, %v790, %v968
        %v1033 = vsel %vm905, %v795, %v969
        %v1034 = vsel %vm906, %v798, %v970
        %v1035 = vsel %vm907, %v803, %v971
        %v1036 = vsel %vm908, %v806, %v972
        %v1037 = vsel %vm909, %v811, %v973
        %v1038 = vsel %vm910, %v814, %v974
        %v1039 = vsel %vm911, %v819, %v975
        %v1040 = vsel %vm912, %v822, %v976
        %v1041 = vsel %vm913, %v827, %v977
        %v1042 = vsel %vm914, %v830, %v978
        %v1043 = vsel %vm915, %v835, %v979
        %v1044 = vsel %vm916, %v838, %v980
        %v1045 = vsel %vm917, %v843, %v981
        %v1046 = vsel %vm918, %v846, %v982
        %v1047 = vsel %vm919, %v851, %v983
        %v1048 = vsel %vm920, %v854, %v984
        %v1049 = vpack.c.bf16 %v986, %v985
        %v1050 = vpack.c.bf16 %v988, %v987
        %v1051 = vpack.c.bf16 %v990, %v989
        %v1052 = vpack.c.bf16 %v992, %v991
        %v1053 = vpack.c.bf16 %v994, %v993
        %v1054 = vpack.c.bf16 %v996, %v995
        %v1055 = vpack.c.bf16 %v998, %v997
        %v1056 = vpack.c.bf16 %v1000, %v999
        %v1057 = vpack.c.bf16 %v1002, %v1001
        %v1058 = vpack.c.bf16 %v1004, %v1003
        %v1059 = vpack.c.bf16 %v1006, %v1005
        %v1060 = vpack.c.bf16 %v1008, %v1007
        %v1061 = vpack.c.bf16 %v1010, %v1009
        %v1062 = vpack.c.bf16 %v1012, %v1011
        %v1063 = vpack.c.bf16 %v1014, %v1013
        %v1064 = vpack.c.bf16 %v1016, %v1015
        %v1065 = vpack.c.bf16 %v1018, %v1017
        %v1066 = vpack.c.bf16 %v1020, %v1019
        %v1067 = vpack.c.bf16 %v1022, %v1021
        %v1068 = vpack.c.bf16 %v1024, %v1023
        %v1069 = vpack.c.bf16 %v1026, %v1025
        %v1070 = vpack.c.bf16 %v1028, %v1027
        %v1071 = vpack.c.bf16 %v1030, %v1029
        %v1072 = vpack.c.bf16 %v1032, %v1031
        %v1073 = vpack.c.bf16 %v1034, %v1033
        %v1074 = vpack.c.bf16 %v1036, %v1035
        %v1075 = vpack.c.bf16 %v1038, %v1037
        %v1076 = vpack.c.bf16 %v1040, %v1039
        %v1077 = vpack.c.bf16 %v1042, %v1041
        %v1078 = vpack.c.bf16 %v1044, %v1043
        %v1079 = vpack.c.bf16 %v1046, %v1045
        %v1080 = vpack.c.bf16 %v1048, %v1047
        %v1113 = vunpack.c.l.b16 %v1049
        %v1114 = vunpack.c.h.b16 %v1049
        %v1115 = vunpack.c.l.b16 %v1050
        %v1116 = vunpack.c.h.b16 %v1050
        %v1117 = vunpack.c.l.b16 %v1051
        %v1118 = vunpack.c.h.b16 %v1051
        %v1119 = vunpack.c.l.b16 %v1052
        %v1120 = vunpack.c.h.b16 %v1052
        %v1121 = vunpack.c.l.b16 %v1053
        %v1122 = vunpack.c.h.b16 %v1053
        %v1123 = vunpack.c.l.b16 %v1054
        %v1124 = vunpack.c.h.b16 %v1054
        %v1125 = vunpack.c.l.b16 %v1055
        %v1126 = vunpack.c.h.b16 %v1055
        %v1127 = vunpack.c.l.b16 %v1056
        %v1128 = vunpack.c.h.b16 %v1056
        %v1129 = vunpack.c.l.b16 %v1057
        %v1130 = vunpack.c.h.b16 %v1057
        %v1131 = vunpack.c.l.b16 %v1058
        %v1132 = vunpack.c.h.b16 %v1058
        %v1133 = vunpack.c.l.b16 %v1059
        %v1134 = vunpack.c.h.b16 %v1059
        %v1135 = vunpack.c.l.b16 %v1060
        %v1136 = vunpack.c.h.b16 %v1060
        %v1137 = vunpack.c.l.b16 %v1061
        %v1138 = vunpack.c.h.b16 %v1061
        %v1139 = vunpack.c.l.b16 %v1062
        %v1140 = vunpack.c.h.b16 %v1062
        %v1141 = vunpack.c.l.b16 %v1063
        %v1142 = vunpack.c.h.b16 %v1063
        %v1143 = vunpack.c.l.b16 %v1064
        %v1144 = vunpack.c.h.b16 %v1064
        %v1145 = vunpack.c.l.b16 %v1065
        %v1146 = vunpack.c.h.b16 %v1065
        %v1147 = vunpack.c.l.b16 %v1066
        %v1148 = vunpack.c.h.b16 %v1066
        %v1149 = vunpack.c.l.b16 %v1067
        %v1150 = vunpack.c.h.b16 %v1067
        %v1151 = vunpack.c.l.b16 %v1068
        %v1152 = vunpack.c.h.b16 %v1068
        %v1153 = vunpack.c.l.b16 %v1069
        %v1154 = vunpack.c.h.b16 %v1069
        %v1155 = vunpack.c.l.b16 %v1070
        %v1156 = vunpack.c.h.b16 %v1070
        %v1157 = vunpack.c.l.b16 %v1071
        %v1158 = vunpack.c.h.b16 %v1071
        %v1159 = vunpack.c.l.b16 %v1072
        %v1160 = vunpack.c.h.b16 %v1072
        %v1161 = vunpack.c.l.b16 %v1073
        %v1162 = vunpack.c.h.b16 %v1073
        %v1163 = vunpack.c.l.b16 %v1074
        %v1164 = vunpack.c.h.b16 %v1074
        %v1165 = vunpack.c.l.b16 %v1075
        %v1166 = vunpack.c.h.b16 %v1075
        %v1167 = vunpack.c.l.b16 %v1076
        %v1168 = vunpack.c.h.b16 %v1076
        %v1169 = vunpack.c.l.b16 %v1077
        %v1170 = vunpack.c.h.b16 %v1077
        %v1171 = vunpack.c.l.b16 %v1078
        %v1172 = vunpack.c.h.b16 %v1078
        %v1173 = vunpack.c.l.b16 %v1079
        %v1174 = vunpack.c.h.b16 %v1079
        %v1175 = vunpack.c.l.b16 %v1080
        %v1176 = vunpack.c.h.b16 %v1080
        %v1177 = vpack.c.b16 %v1113, %v1113
        %v1178 = vpack.c.b16 %v1114, %v1114
        %v1179 = vpack.c.b16 %v1115, %v1115
        %v1180 = vpack.c.b16 %v1116, %v1116
        %v1181 = vpack.c.b16 %v1117, %v1117
        %v1182 = vpack.c.b16 %v1118, %v1118
        %v1183 = vpack.c.b16 %v1119, %v1119
        %v1184 = vpack.c.b16 %v1120, %v1120
        %v1185 = vpack.c.b16 %v1121, %v1121
        %v1186 = vpack.c.b16 %v1122, %v1122
        %v1187 = vpack.c.b16 %v1123, %v1123
        %v1188 = vpack.c.b16 %v1124, %v1124
        %v1189 = vpack.c.b16 %v1125, %v1125
        %v1190 = vpack.c.b16 %v1126, %v1126
        %v1191 = vpack.c.b16 %v1127, %v1127
        %v1192 = vpack.c.b16 %v1128, %v1128
        %v1193 = vpack.c.b16 %v1129, %v1129
        %v1194 = vpack.c.b16 %v1130, %v1130
        %v1195 = vpack.c.b16 %v1131, %v1131
        %v1196 = vpack.c.b16 %v1132, %v1132
        %v1197 = vpack.c.b16 %v1133, %v1133
        %v1198 = vpack.c.b16 %v1134, %v1134
        %v1199 = vpack.c.b16 %v1135, %v1135
        %v1200 = vpack.c.b16 %v1136, %v1136
        %v1201 = vpack.c.b16 %v1137, %v1137
        %v1202 = vpack.c.b16 %v1138, %v1138
        %v1203 = vpack.c.b16 %v1139, %v1139
        %v1204 = vpack.c.b16 %v1140, %v1140
        %v1205 = vpack.c.b16 %v1141, %v1141
        %v1206 = vpack.c.b16 %v1142, %v1142
        %v1207 = vpack.c.b16 %v1143, %v1143
        %v1208 = vpack.c.b16 %v1144, %v1144
        %v1209 = vpack.c.b16 %v1145, %v1145
        %v1210 = vpack.c.b16 %v1146, %v1146
        %v1211 = vpack.c.b16 %v1147, %v1147
        %v1212 = vpack.c.b16 %v1148, %v1148
        %v1213 = vpack.c.b16 %v1149, %v1149
        %v1214 = vpack.c.b16 %v1150, %v1150
        %v1215 = vpack.c.b16 %v1151, %v1151
        %v1216 = vpack.c.b16 %v1152, %v1152
        %v1217 = vpack.c.b16 %v1153, %v1153
        %v1218 = vpack.c.b16 %v1154, %v1154
        %v1219 = vpack.c.b16 %v1155, %v1155
        %v1220 = vpack.c.b16 %v1156, %v1156
        %v1221 = vpack.c.b16 %v1157, %v1157
        %v1222 = vpack.c.b16 %v1158, %v1158
        %v1223 = vpack.c.b16 %v1159, %v1159
        %v1224 = vpack.c.b16 %v1160, %v1160
        %v1225 = vpack.c.b16 %v1161, %v1161
        %v1226 = vpack.c.b16 %v1162, %v1162
        %v1227 = vpack.c.b16 %v1163, %v1163
        %v1228 = vpack.c.b16 %v1164, %v1164
        %v1229 = vpack.c.b16 %v1165, %v1165
        %v1230 = vpack.c.b16 %v1166, %v1166
        %v1231 = vpack.c.b16 %v1167, %v1167
        %v1232 = vpack.c.b16 %v1168, %v1168
        %v1233 = vpack.c.b16 %v1169, %v1169
        %v1234 = vpack.c.b16 %v1170, %v1170
        %v1235 = vpack.c.b16 %v1171, %v1171
        %v1236 = vpack.c.b16 %v1172, %v1172
        %v1237 = vpack.c.b16 %v1173, %v1173
        %v1238 = vpack.c.b16 %v1174, %v1174
        %v1239 = vpack.c.b16 %v1175, %v1175
        %v1240 = vpack.c.b16 %v1176, %v1176
        %1305 = vst [vmem:[%s202] sm:$0xf] %v1177
        %1306 = vst [vmem:[%s202 + $0x4] sm:$0xf] %v1178
        %1307 = vst [vmem:[%s202 + $0x8] sm:$0xf] %v1179
        %1308 = vst [vmem:[%s202 + $0xc] sm:$0xf] %v1180
        %1309 = vst [vmem:[%s202 + $0x10] sm:$0xf] %v1181
        %1310 = vst [vmem:[%s202 + $0x14] sm:$0xf] %v1182
        %1311 = vst [vmem:[%s202 + $0x18] sm:$0xf] %v1183
        %1312 = vst [vmem:[%s202 + $0x1c] sm:$0xf] %v1184
        %1313 = vst [vmem:[%s202 + $0x20] sm:$0xf] %v1185
        %1314 = vst [vmem:[%s202 + $0x24] sm:$0xf] %v1186
        %1315 = vst [vmem:[%s202 + $0x28] sm:$0xf] %v1187
        %1316 = vst [vmem:[%s202 + $0x2c] sm:$0xf] %v1188
        %1317 = vst [vmem:[%s202 + $0x30] sm:$0xf] %v1189
        %1318 = vst [vmem:[%s202 + $0x34] sm:$0xf] %v1190
        %1319 = vst [vmem:[%s202 + $0x38] sm:$0xf] %v1191
        %1320 = vst [vmem:[%s202 + $0x3c] sm:$0xf] %v1192
        %1321 = vst [vmem:[%s202 + $0x40] sm:$0xf] %v1193
        %1322 = vst [vmem:[%s202 + $0x44] sm:$0xf] %v1194
        %1323 = vst [vmem:[%s202 + $0x48] sm:$0xf] %v1195
        %1324 = vst [vmem:[%s202 + $0x4c] sm:$0xf] %v1196
        %1325 = vst [vmem:[%s202 + $0x50] sm:$0xf] %v1197
        %1326 = vst [vmem:[%s202 + $0x54] sm:$0xf] %v1198
        %1327 = vst [vmem:[%s202 + $0x58] sm:$0xf] %v1199
        %1328 = vst [vmem:[%s202 + $0x5c] sm:$0xf] %v1200
        %1329 = vst [vmem:[%s202 + $0x60] sm:$0xf] %v1201
        %1330 = vst [vmem:[%s202 + $0x64] sm:$0xf] %v1202
        %1331 = vst [vmem:[%s202 + $0x68] sm:$0xf] %v1203
        %1332 = vst [vmem:[%s202 + $0x6c] sm:$0xf] %v1204
        %1333 = vst [vmem:[%s202 + $0x70] sm:$0xf] %v1205
        %1334 = vst [vmem:[%s202 + $0x74] sm:$0xf] %v1206
        %1335 = vst [vmem:[%s202 + $0x78] sm:$0xf] %v1207
        %1336 = vst [vmem:[%s202 + $0x7c] sm:$0xf] %v1208
        %1337 = vst [vmem:[%s202 + $0x80] sm:$0xf] %v1209
        %1338 = vst [vmem:[%s202 + $0x84] sm:$0xf] %v1210
        %1339 = vst [vmem:[%s202 + $0x88] sm:$0xf] %v1211
        %1340 = vst [vmem:[%s202 + $0x8c] sm:$0xf] %v1212
        %1341 = vst [vmem:[%s202 + $0x90] sm:$0xf] %v1213
        %1342 = vst [vmem:[%s202 + $0x94] sm:$0xf] %v1214
        %1343 = vst [vmem:[%s202 + $0x98] sm:$0xf] %v1215
        %1344 = vst [vmem:[%s202 + $0x9c] sm:$0xf] %v1216
        %1345 = vst [vmem:[%s202 + $0xa0] sm:$0xf] %v1217
        %1346 = vst [vmem:[%s202 + $0xa4] sm:$0xf] %v1218
        %1347 = vst [vmem:[%s202 + $0xa8] sm:$0xf] %v1219
        %1348 = vst [vmem:[%s202 + $0xac] sm:$0xf] %v1220
        %1349 = vst [vmem:[%s202 + $0xb0] sm:$0xf] %v1221
        %1350 = vst [vmem:[%s202 + $0xb4] sm:$0xf] %v1222
        %1351 = vst [vmem:[%s202 + $0xb8] sm:$0xf] %v1223
        %1352 = vst [vmem:[%s202 + $0xbc] sm:$0xf] %v1224
        %1353 = vst [vmem:[%s202 + $0xc0] sm:$0xf] %v1225
        %1354 = vst [vmem:[%s202 + $0xc4] sm:$0xf] %v1226
        %1355 = vst [vmem:[%s202 + $0xc8] sm:$0xf] %v1227
        %1356 = vst [vmem:[%s202 + $0xcc] sm:$0xf] %v1228
        %1357 = vst [vmem:[%s202 + $0xd0] sm:$0xf] %v1229
        %1358 = vst [vmem:[%s202 + $0xd4] sm:$0xf] %v1230
        %1359 = vst [vmem:[%s202 + $0xd8] sm:$0xf] %v1231
        %1360 = vst [vmem:[%s202 + $0xdc] sm:$0xf] %v1232
        %1361 = vst [vmem:[%s202 + $0xe0] sm:$0xf] %v1233
        %1362 = vst [vmem:[%s202 + $0xe4] sm:$0xf] %v1234
        %1363 = vst [vmem:[%s202 + $0xe8] sm:$0xf] %v1235
        %1364 = vst [vmem:[%s202 + $0xec] sm:$0xf] %v1236
        %1365 = vst [vmem:[%s202 + $0xf0] sm:$0xf] %v1237
        %1366 = vst [vmem:[%s202 + $0xf4] sm:$0xf] %v1238
        %1367 = vst [vmem:[%s202 + $0xf8] sm:$0xf] %v1239
        %1368 = vst [vmem:[%s202 + $0xfc] sm:$0xf] %v1240
        %s1369 = sand.u32 %s117, 1
        %s1370 = scalar_lea.sflag [#allocation3], %s1369
        %s1371 = sand.u32 %s117, 1
        %s1372 = smul.addr %s1371, 256
        %s1373 = scalar_lea.vmem [#allocation2], %s1372
        // Predicated region
        $region33: #{tpu_custom_call.1} parent=31 // pred_check
          %p1374 = pneg %p127
        $region34: #{tpu_custom_call.1} parent=31 // pred_check_branch
          %1376 = sbr.rel (%p1374) target = $region36
        $region35: #{tpu_custom_call.1} parent=31 // pred_region
          %s1377 = smul.u32 64, %s21
          %s1379 = ssub.s32 4096, 4096
          %1380 = vsyncadd %s1370, %s1379
          %s1381 = sadd.s32 %s22, %s1377
          %s1382 = smul.addr %s1381, 64
          %s1383 = scalar_lea.hbm %s3, %s1382
          %s1384 = sshll.u32 %s1373, 4
          %s1385 = int_to_ptr.vmem [resolvable:$true] %s1384
          %1390 = dma.vmem_to_hbm [thread:$0]  %s1385, 4096, %s1383, %s1370, 64, 64, 4
        $region36: #{tpu_custom_call.1} parent=31 // pred_fallthru
          _
      $region32: #{tpu_custom_call.1} parent=5 // pred_fallthru
        _
      %p1391 = scmp.le.s32.totalorder 2, %s12
      // Predicated region
      $region37: #{tpu_custom_call.1} parent=5 // pred_check
        %p1392 = pneg %p1391
      $region38: #{tpu_custom_call.1} parent=5 // pred_check_branch
        %1394 = sbr.rel (%p1392) target = $region40
      $region39: #{tpu_custom_call.1} parent=5 // pred_region
        %s1395 = ssub.s32 %s12, 2
        // Predicated region
        $region41: #{tpu_custom_call.1} parent=39 // pred_check
          %p1396 = pneg %p133
        $region42: #{tpu_custom_call.1} parent=39 // pred_check_branch
          %1398 = sbr.rel (%p1396) target = $region44
        $region43: #{tpu_custom_call.1} parent=39 // pred_region
          %s1399 = sand.u32 %s118, 1
          %s1400 = scalar_lea.sflag [#allocation3], %s1399
          %s1401 = sand.u32 %s118, 1
          %s1402 = smul.addr %s1401, 256
          %s1403 = scalar_lea.vmem [#allocation2], %s1402
          %1404 = dma.done %s1400, 4096
        $region44: #{tpu_custom_call.1} parent=39 // pred_fallthru
          _
      $region40: #{tpu_custom_call.1} parent=5 // pred_fallthru
        _
    $region6: #{tpu_custom_call.1} parent=1 // loop_footer
      %s16 = sadd.s32 1, %s12
    $region7: #{tpu_custom_call.1} parent=1 // loop_footer_branch
      %11 = sbr.rel target = $region3
    $region8: #{tpu_custom_call.1} parent=1 // loop_exit
      _
    %1405 = vsyncpa [#allocation3], 1
    %s1406 = scalar_lea.sflag [#allocation3], 1
    %1407 = vsyncpa %s1406, 1

</llo_original>
